<compile_context>
chip_gen: v7x
topology: tpu7x:2x2x1
jax: 0.10.0
libtpu: 0.0.40
codegen_flags: <defaults>
</compile_context>

<pallas_src>
import jax
import jax.numpy as jnp
from jax import lax
from jax.experimental import pallas as pl
from jax.experimental.pallas import tpu as pltpu


def _senet_kernel(x_ref, w1_ref, w2_ref, o_ref):
    x = x_ref[...]                                       # (TB, C)
    # squeeze: x @ W1^T   (W1 kept in PyTorch (hidden, C) layout)
    h = lax.dot_general(
        x, w1_ref[...],
        dimension_numbers=(((1,), (1,)), ((), ())),
        preferred_element_type=jnp.float32)              # (TB, hidden)
    h = jnp.maximum(h, 0.0)
    # excitation: h @ W2^T (W2 is (C, hidden))
    g = lax.dot_general(
        h, w2_ref[...],
        dimension_numbers=(((1,), (1,)), ((), ())),
        preferred_element_type=jnp.float32)              # (TB, C)
    g = jax.nn.sigmoid(g)                                # EUP
    # gate in the input dtype (bf16 VPU path on v6e/v7x; f32 otherwise)
    o_ref[...] = (x * g.astype(x.dtype)).astype(o_ref.dtype)


def _auto_block_rows(B, C, hidden, itemsize):
    """Pick a batch-tile size that keeps double-buffered x/out + resident
    weights comfortably inside this generation's VMEM."""
    try:
        vmem_cap = pltpu.get_tpu_info().vmem_capacity_bytes
    except Exception:  # pragma: no cover - be robust if the query is unavailable
        vmem_cap = 64 * 1024 * 1024          # conservative (v7x per-TC)
    weight_bytes = 2 * 2 * C * hidden * itemsize      # both weights, 2 buffers
    budget = int(vmem_cap * 0.5) - weight_bytes       # headroom for scratch
    per_row = 2 * 2 * C * itemsize                    # x + out, double-buffered
    tb = budget // max(per_row, 1)
    tb = int(min(max(tb, 8), 1024))
    tb = (tb // 8) * 8
    if tb >= B:
        return B, weight_bytes                        # single full-batch tile
    return tb, weight_bytes


def senet_forward(x, w1, w2, block_rows=None):
    """x: (B, C); w1: (C//r, C) PyTorch layout; w2: (C, C//r) PyTorch layout."""
    B, C = x.shape
    hidden = w1.shape[0]
    itemsize = jnp.dtype(x.dtype).itemsize

    auto_tb, weight_bytes = _auto_block_rows(B, C, hidden, itemsize)
    tb = auto_tb if block_rows is None else min(block_rows, B)

    # Raise the scoped-VMEM limit when the pipeline actually needs it
    # (defaults: 16 MiB v5e, 32 MiB v6e/v7x).
    need = 2 * 2 * tb * C * itemsize + weight_bytes + (4 << 20)
    vmem_limit = max(need, 32 << 20)

    grid = (pl.cdiv(B, tb),)
    return pl.pallas_call(
        _senet_kernel,
        out_shape=jax.ShapeDtypeStruct((B, C), x.dtype),
        grid_spec=pltpu.PrefetchScalarGridSpec(
            num_scalar_prefetch=0,
            grid=grid,
            in_specs=[
                pl.BlockSpec((tb, C), lambda i: (i, 0)),      # x: batch-tiled
                pl.BlockSpec(w1.shape, lambda i: (0, 0)),     # W1: resident
                pl.BlockSpec(w2.shape, lambda i: (0, 0)),     # W2: resident
            ],
            out_specs=pl.BlockSpec((tb, C), lambda i: (i, 0)),
        ),
        compiler_params=pltpu.CompilerParams(
            dimension_semantics=("parallel",),   # independent batch tiles
            vmem_limit_bytes=int(vmem_limit),
        ),
    )(x, w1, w2)


def senet_reference(x, w1, w2):
    h = jnp.maximum(x @ w1.T, 0.0)
    g = jax.nn.sigmoid(h @ w2.T)
    return x * g


if __name__ == "__main__":
    key = jax.random.PRNGKey(0)
    B, C, ratio = 64, 128, 8
    hidden = C // ratio

    k_x, k_w1, k_w2 = jax.random.split(key, 3)
    x = jax.random.normal(k_x, (B, C), dtype=jnp.float32)
    # PyTorch Linear weight layout: (out_features, in_features)
    w1 = jax.random.normal(k_w1, (hidden, C), dtype=jnp.float32) * 0.1
    w2 = jax.random.normal(k_w2, (C, hidden), dtype=jnp.float32) * 0.1

    ref = senet_reference(x, w1, w2)

    # 1) auto tile size (single tile at this small shape)
    out = jax.block_until_ready(senet_forward(x, w1, w2))
    assert jnp.allclose(out, ref, atol=1e-5, rtol=1e-5), "mismatch vs reference (auto tile)"

    # 2) forced small tile to exercise the multi-step pipelined grid
    out_tiled = jax.block_until_ready(senet_forward(x, w1, w2, block_rows=16))
    assert jnp.allclose(out_tiled, ref, atol=1e-5, rtol=1e-5), "mismatch vs reference (tiled)"

    print("KERNEL_OK")
</pallas_src>

<mosaic_0001>
module attributes {stable_mosaic.version = 11 : i64} {
  func.func @_senet_kernel(%arg0: i32, %arg1: memref<64x128xf32, #tpu.memory_space<vmem>>, %arg2: memref<16x128xf32, #tpu.memory_space<vmem>>, %arg3: memref<128x16xf32, #tpu.memory_space<vmem>>, %arg4: memref<64x128xf32, #tpu.memory_space<vmem>>) attributes {dimension_semantics = [#tpu.dimension_semantics<parallel>], iteration_bounds = array<i64: 1>, scalar_prefetch = 0 : i64, scratch_operands = 0 : i64, tpu.core_type = #tpu.core_type<tc>, window_params = [{transform_indices = @transform_0, window_bounds = array<i64: 64, 128>}, {pipeline_mode = #tpu.pipeline_mode<synchronous>, transform_indices = @transform_1, window_bounds = array<i64: 16, 128>}, {pipeline_mode = #tpu.pipeline_mode<synchronous>, transform_indices = @transform_2, window_bounds = array<i64: 128, 16>}, {transform_indices = @transform_3, window_bounds = array<i64: 64, 128>}]} {
    %c0 = arith.constant 0 : index
    %c0_0 = arith.constant 0 : index
    %0 = vector.load %arg1[%c0, %c0_0] : memref<64x128xf32, #tpu.memory_space<vmem>>, vector<64x128xf32>
    %c0_1 = arith.constant 0 : index
    %c0_2 = arith.constant 0 : index
    %1 = vector.load %arg2[%c0_1, %c0_2] : memref<16x128xf32, #tpu.memory_space<vmem>>, vector<16x128xf32>
    %cst = arith.constant dense<0.000000e+00> : vector<64x16xf32>
    %2 = tpu.matmul %0, %1, %cst {dimension_numbers = #tpu.dot_dimension_numbers<[1], [1], [0], [0], [0, 0, 1, 0], [], []>} : vector<64x128xf32>, vector<16x128xf32>, vector<64x16xf32> -> vector<64x16xf32>
    %cst_3 = arith.constant 0.000000e+00 : f32
    %3 = vector.broadcast %cst_3 : f32 to vector<64x16xf32>
    %4 = arith.maximumf %2, %3 : vector<64x16xf32>
    %c0_4 = arith.constant 0 : index
    %c0_5 = arith.constant 0 : index
    %5 = vector.load %arg3[%c0_4, %c0_5] : memref<128x16xf32, #tpu.memory_space<vmem>>, vector<128x16xf32>
    %cst_6 = arith.constant dense<0.000000e+00> : vector<64x128xf32>
    %6 = tpu.matmul %4, %5, %cst_6 {dimension_numbers = #tpu.dot_dimension_numbers<[1], [1], [0], [0], [0, 0, 1, 0], [], []>} : vector<64x16xf32>, vector<128x16xf32>, vector<64x128xf32> -> vector<64x128xf32>
    %7 = arith.negf %6 : vector<64x128xf32>
    %8 = math.exp %7 : vector<64x128xf32>
    %cst_7 = arith.constant 1.000000e+00 : f32
    %9 = vector.broadcast %cst_7 : f32 to vector<64x128xf32>
    %10 = arith.addf %9, %8 : vector<64x128xf32>
    %11 = arith.divf %9, %10 : vector<64x128xf32>
    %12 = arith.mulf %0, %11 : vector<64x128xf32>
    %c0_8 = arith.constant 0 : index
    %c0_9 = arith.constant 0 : index
    %13 = vector.load %arg4[%c0_8, %c0_9] : memref<64x128xf32, #tpu.memory_space<vmem>>, vector<64x128xf32>
    tpu.vector_store %arg4[%c0_8, %c0_9], %12 {strides = array<i32>} : memref<64x128xf32, #tpu.memory_space<vmem>>, vector<64x128xf32>,
    return
  }
  func.func @transform_0(%arg0: i32) -> (i32, i32) {
    %c0_i32 = arith.constant 0 : i32
    %c0_i32_0 = arith.constant 0 : i32
    return %arg0, %c0_i32 : i32, i32
  }
  func.func @transform_1(%arg0: i32) -> (i32, i32) {
    %c0_i32 = arith.constant 0 : i32
    %c0_i32_0 = arith.constant 0 : i32
    %c0_i32_1 = arith.constant 0 : i32
    return %c0_i32, %c0_i32_0 : i32, i32
  }
  func.func @transform_2(%arg0: i32) -> (i32, i32) {
    %c0_i32 = arith.constant 0 : i32
    %c0_i32_0 = arith.constant 0 : i32
    %c0_i32_1 = arith.constant 0 : i32
    return %c0_i32, %c0_i32_0 : i32, i32
  }
  func.func @transform_3(%arg0: i32) -> (i32, i32) {
    %c0_i32 = arith.constant 0 : i32
    %c0_i32_0 = arith.constant 0 : i32
    return %arg0, %c0_i32 : i32, i32
  }
}

</mosaic_0001>

<llo_original>
// kernel: tpu_custom_call.1
$region0: #{tpu_custom_call.1}
  #allocation0 [shape = 'u32[]', space=smem, size = 0x4, offset = 0x4, fixed_abs, tag = 'smem constant byte address 0x4 - core index']
  #allocation1 [shape = 'u32[144,128]{1,0:T(1,128)}', space=vmem, size = 0x12000, scoped, tag = 'internal scratch']
  %s0 = inlined_call_operand.vmem [shape: f32[64,128], index: 0, kind: input, shape index: {}]
  %s1 = inlined_call_operand.vmem [shape: f32[16,128], index: 1, kind: input, shape index: {}]
  %s2 = inlined_call_operand.vmem [shape: f32[128,16], index: 2, kind: input, shape index: {}]
  %s3 = inlined_call_operand.hbm [shape: f32[64,128], index: 3, kind: output, shape index: {}]
  %s4 = sld [smem:[#allocation0]]
  $region22: #{tpu_custom_call.1} parent=0
    _
  %s6 = ssub.s32 1, %s4
  %s7 = scalar_select 0, %s6, %s4
  $region1: #{tpu_custom_call.1} parent=0
    #allocation2 [shape = 'u8[32768]{0}', space=vmem, size = 0x8000, scoped, tag = 'output window, operand 0, single buffered']
    #allocation3 [shape = 's32[1]{0}', space=sflag, size = 0x4, scoped, tag = 'scoped memory for tpu_custom_call.1']
    %8 = vsyncpa [#allocation3], 0
    // Predicated region
    $region2: #{tpu_custom_call.1} parent=1 // pred_check
      _
    $region3: #{tpu_custom_call.1} parent=1 // pred_check_branch
      %10 = sbr.rel (0) target = $region5
    $region4: #{tpu_custom_call.1} parent=1 // pred_region
      _
    $region5: #{tpu_custom_call.1} parent=1 // pred_fallthru
      _
    // Predicated region
    $region6: #{tpu_custom_call.1} parent=1 // pred_check
      _
    $region7: #{tpu_custom_call.1} parent=1 // pred_check_branch
      %12 = sbr.rel (0) target = $region9
    $region8: #{tpu_custom_call.1} parent=1 // pred_region
      _
    $region9: #{tpu_custom_call.1} parent=1 // pred_fallthru
      _
    // Predicated region
    $region10: #{tpu_custom_call.1} parent=1 // pred_check
      _
    $region11: #{tpu_custom_call.1} parent=1 // pred_check_branch
      %14 = sbr.rel (0) target = $region13
    $region12: #{tpu_custom_call.1} parent=1 // pred_region
      _
    $region13: #{tpu_custom_call.1} parent=1 // pred_fallthru
      _
    %v15 = vld [vmem:[%s0] sm:$0xff]
    %v16 = vld [vmem:[%s0 + $0x8] sm:$0xff]
    %v17 = vld [vmem:[%s0 + $0x10] sm:$0xff]
    %v18 = vld [vmem:[%s0 + $0x18] sm:$0xff]
    %v19 = vld [vmem:[%s0 + $0x20] sm:$0xff]
    %v20 = vld [vmem:[%s0 + $0x28] sm:$0xff]
    %v21 = vld [vmem:[%s0 + $0x30] sm:$0xff]
    %v22 = vld [vmem:[%s0 + $0x38] sm:$0xff]
    %v23 = vld [vmem:[%s1] sm:$0xff]
    %v24 = vld [vmem:[%s1 + $0x8] sm:$0xff]
    %25 = vmatprep.subr.mxu0 0.0
    %26 = vmatpush1.xpose.msra.mxu0 %v23
    %27 = vmatprep.subr.mxu0 0.0
    %28 = vmatpush1.xpose.msra.mxu0 %v24
    %29 = vmatprep.subr.mxu0 0.0
    %30 = vmatpush1.xpose.msra.mxu0 0.0
    %31 = vmatprep.subr.mxu0 0.0
    %32 = vmatpush1.xpose.msra.mxu0 0.0
    %33 = vmatprep.subr.mxu0 0.0
    %34 = vmatpush1.xpose.msra.mxu0 0.0
    %35 = vmatprep.subr.mxu0 0.0
    %36 = vmatpush1.xpose.msra.mxu0 0.0
    %37 = vmatprep.subr.mxu0 0.0
    %38 = vmatpush1.xpose.msra.mxu0 0.0
    %39 = vmatprep.subr.mxu0 0.0
    %40 = vmatpush1.xpose.msra.mxu0 0.0
    %41 = vmatprep.subr.mxu0 0.0
    %42 = vmatpush1.xpose.msra.mxu0 0.0
    %43 = vmatprep.subr.mxu0 0.0
    %44 = vmatpush1.xpose.msra.mxu0 0.0
    %45 = vmatprep.subr.mxu0 0.0
    %46 = vmatpush1.xpose.msra.mxu0 0.0
    %47 = vmatprep.subr.mxu0 0.0
    %48 = vmatpush1.xpose.msra.mxu0 0.0
    %49 = vmatprep.subr.mxu0 0.0
    %50 = vmatpush1.xpose.msra.mxu0 0.0
    %51 = vmatprep.subr.mxu0 0.0
    %52 = vmatpush1.xpose.msra.mxu0 0.0
    %53 = vmatprep.subr.mxu0 0.0
    %54 = vmatpush1.xpose.msra.mxu0 0.0
    %55 = vmatprep.subr.mxu0 0.0
    %56 = vmatpush1.xpose.msra.mxu0 0.0
    %57 = vmatprep.subr.mxu0 0.0
    %58 = vmatpush1.xpose.msra.mxu0 0.0
    %59 = vmatprep.subr.mxu0 0.0
    %60 = vmatpush1.xpose.msra.mxu0 0.0
    %61 = vmatprep.subr.mxu0 0.0
    %62 = vmatpush1.xpose.msra.mxu0 0.0
    %63 = vmatprep.subr.mxu0 0.0
    %64 = vmatpush1.xpose.msra.mxu0 0.0
    %65 = vmatprep.subr.mxu0 0.0
    %66 = vmatpush1.xpose.msra.mxu0 0.0
    %67 = vmatprep.subr.mxu0 0.0
    %68 = vmatpush1.xpose.msra.mxu0 0.0
    %69 = vmatprep.subr.mxu0 0.0
    %70 = vmatpush1.xpose.msra.mxu0 0.0
    %71 = vmatprep.subr.mxu0 0.0
    %72 = vmatpush1.xpose.msra.mxu0 0.0
    %73 = vmatprep.subr.mxu0 0.0
    %74 = vmatpush1.xpose.msra.mxu0 0.0
    %75 = vmatprep.subr.mxu0 0.0
    %76 = vmatpush1.xpose.msra.mxu0 0.0
    %77 = vmatprep.subr.mxu0 0.0
    %78 = vmatpush1.xpose.msra.mxu0 0.0
    %79 = vmatprep.subr.mxu0 0.0
    %80 = vmatpush1.xpose.msra.mxu0 0.0
    %81 = vmatprep.subr.mxu0 0.0
    %82 = vmatpush1.xpose.msra.mxu0 0.0
    %83 = vmatprep.subr.mxu0 0.0
    %84 = vmatpush1.xpose.msra.mxu0 0.0
    %85 = vmatprep.subr.mxu0 0.0
    %86 = vmatpush1.xpose.msra.mxu0 0.0
    %87 = vmatprep.subr.mxu0 0.0
    %88 = vmatpush1.xpose.msra.mxu0 0.0
    %89 = vmatprep.mubr.f32.mxu0 0.0
    %90 = vmatmul.mubr.f32.gmra.mrb[0].mxu0 %v15
    %v91 = vpop.f32.mrb[0].mxu0
    %v92 = vadd.f32 0.0, %v91
    %v93 = vpop.f32.mrb[0].mxu0
    %94 = vmatprep.mubr.f32.mxu0 0.0
    %95 = vmatmul.mubr.f32.gmra.mrb[0].mxu0 %v16
    %v96 = vpop.f32.mrb[0].mxu0
    %v97 = vadd.f32 0.0, %v96
    %v98 = vpop.f32.mrb[0].mxu0
    %99 = vmatprep.mubr.f32.mxu0 0.0
    %100 = vmatmul.mubr.f32.gmra.mrb[0].mxu0 %v17
    %v101 = vpop.f32.mrb[0].mxu0
    %v102 = vadd.f32 0.0, %v101
    %v103 = vpop.f32.mrb[0].mxu0
    %104 = vmatprep.mubr.f32.mxu0 0.0
    %105 = vmatmul.mubr.f32.gmra.mrb[0].mxu0 %v18
    %v106 = vpop.f32.mrb[0].mxu0
    %v107 = vadd.f32 0.0, %v106
    %v108 = vpop.f32.mrb[0].mxu0
    %109 = vmatprep.mubr.f32.mxu0 0.0
    %110 = vmatmul.mubr.f32.gmra.mrb[0].mxu0 %v19
    %v111 = vpop.f32.mrb[0].mxu0
    %v112 = vadd.f32 0.0, %v111
    %v113 = vpop.f32.mrb[0].mxu0
    %114 = vmatprep.mubr.f32.mxu0 0.0
    %115 = vmatmul.mubr.f32.gmra.mrb[0].mxu0 %v20
    %v116 = vpop.f32.mrb[0].mxu0
    %v117 = vadd.f32 0.0, %v116
    %v118 = vpop.f32.mrb[0].mxu0
    %119 = vmatprep.mubr.f32.mxu0 0.0
    %120 = vmatmul.mubr.f32.gmra.mrb[0].mxu0 %v21
    %v121 = vpop.f32.mrb[0].mxu0
    %v122 = vadd.f32 0.0, %v121
    %v123 = vpop.f32.mrb[0].mxu0
    %124 = vmatprep.mubr.f32.mxu0 0.0
    %125 = vmatmul.mubr.f32.gmra.mrb[0].mxu0 %v22
    %v126 = vpop.f32.mrb[0].mxu0
    %v127 = vadd.f32 0.0, %v126
    %v128 = vpop.f32.mrb[0].mxu0
    %129 = vdwg.mxu0
    %v130 = vmax.f32 %v92, 0.0
    %v131 = vmax.f32 %v97, 0.0
    %v132 = vmax.f32 %v102, 0.0
    %v133 = vmax.f32 %v107, 0.0
    %v134 = vmax.f32 %v112, 0.0
    %v135 = vmax.f32 %v117, 0.0
    %v136 = vmax.f32 %v122, 0.0
    %v137 = vmax.f32 %v127, 0.0
    %v138 = vld [vmem:[%s2] sm:$0xff]
    %v139 = vld [vmem:[%s2 + $0x8] sm:$0xff]
    %v140 = vld [vmem:[%s2 + $0x10] sm:$0xff]
    %v141 = vld [vmem:[%s2 + $0x18] sm:$0xff]
    %v142 = vld [vmem:[%s2 + $0x20] sm:$0xff]
    %v143 = vld [vmem:[%s2 + $0x28] sm:$0xff]
    %v144 = vld [vmem:[%s2 + $0x30] sm:$0xff]
    %v145 = vld [vmem:[%s2 + $0x38] sm:$0xff]
    %v146 = vld [vmem:[%s2 + $0x40] sm:$0xff]
    %v147 = vld [vmem:[%s2 + $0x48] sm:$0xff]
    %v148 = vld [vmem:[%s2 + $0x50] sm:$0xff]
    %v149 = vld [vmem:[%s2 + $0x58] sm:$0xff]
    %v150 = vld [vmem:[%s2 + $0x60] sm:$0xff]
    %v151 = vld [vmem:[%s2 + $0x68] sm:$0xff]
    %v152 = vld [vmem:[%s2 + $0x70] sm:$0xff]
    %v153 = vld [vmem:[%s2 + $0x78] sm:$0xff]
    %vm154 = vcmask 130048
    %v156 = vsel %vm154, %v130, 0
    %v159 = vsel %vm154, %v131, 0
    %v162 = vsel %vm154, %v132, 0
    %v165 = vsel %vm154, %v133, 0
    %v168 = vsel %vm154, %v134, 0
    %v171 = vsel %vm154, %v135, 0
    %v174 = vsel %vm154, %v136, 0
    %v177 = vsel %vm154, %v137, 0
    %v180 = vsel %vm154, %v138, 0
    %v183 = vsel %vm154, %v139, 0
    %v186 = vsel %vm154, %v140, 0
    %v189 = vsel %vm154, %v141, 0
    %v192 = vsel %vm154, %v142, 0
    %v195 = vsel %vm154, %v143, 0
    %v198 = vsel %vm154, %v144, 0
    %v201 = vsel %vm154, %v145, 0
    %v204 = vsel %vm154, %v146, 0
    %v207 = vsel %vm154, %v147, 0
    %v210 = vsel %vm154, %v148, 0
    %v213 = vsel %vm154, %v149, 0
    %v216 = vsel %vm154, %v150, 0
    %v219 = vsel %vm154, %v151, 0
    %v222 = vsel %vm154, %v152, 0
    %v225 = vsel %vm154, %v153, 0
    %227 = vmatprep.subr.mxu0 0.0
    %228 = vmatpush1.xpose.msra.mxu0 %v180
    %229 = vmatprep.subr.mxu0 0.0
    %230 = vmatpush1.xpose.msra.mxu0 %v183
    %231 = vmatprep.subr.mxu0 0.0
    %232 = vmatpush1.xpose.msra.mxu0 %v186
    %233 = vmatprep.subr.mxu0 0.0
    %234 = vmatpush1.xpose.msra.mxu0 %v189
    %235 = vmatprep.subr.mxu0 0.0
    %236 = vmatpush1.xpose.msra.mxu0 %v192
    %237 = vmatprep.subr.mxu0 0.0
    %238 = vmatpush1.xpose.msra.mxu0 %v195
    %239 = vmatprep.subr.mxu0 0.0
    %240 = vmatpush1.xpose.msra.mxu0 %v198
    %241 = vmatprep.subr.mxu0 0.0
    %242 = vmatpush1.xpose.msra.mxu0 %v201
    %243 = vmatprep.subr.mxu0 0.0
    %244 = vmatpush1.xpose.msra.mxu0 %v204
    %245 = vmatprep.subr.mxu0 0.0
    %246 = vmatpush1.xpose.msra.mxu0 %v207
    %247 = vmatprep.subr.mxu0 0.0
    %248 = vmatpush1.xpose.msra.mxu0 %v210
    %249 = vmatprep.subr.mxu0 0.0
    %250 = vmatpush1.xpose.msra.mxu0 %v213
    %251 = vmatprep.subr.mxu0 0.0
    %252 = vmatpush1.xpose.msra.mxu0 %v216
    %253 = vmatprep.subr.mxu0 0.0
    %254 = vmatpush1.xpose.msra.mxu0 %v219
    %255 = vmatprep.subr.mxu0 0.0
    %256 = vmatpush1.xpose.msra.mxu0 %v222
    %257 = vmatprep.subr.mxu0 0.0
    %258 = vmatpush1.xpose.msra.mxu0 %v225
    %259 = vmatprep.subr.mxu0 0.0
    %260 = vmatpush1.xpose.msra.mxu0 0.0
    %261 = vmatprep.subr.mxu0 0.0
    %262 = vmatpush1.xpose.msra.mxu0 0.0
    %263 = vmatprep.subr.mxu0 0.0
    %264 = vmatpush1.xpose.msra.mxu0 0.0
    %265 = vmatprep.subr.mxu0 0.0
    %266 = vmatpush1.xpose.msra.mxu0 0.0
    %267 = vmatprep.subr.mxu0 0.0
    %268 = vmatpush1.xpose.msra.mxu0 0.0
    %269 = vmatprep.subr.mxu0 0.0
    %270 = vmatpush1.xpose.msra.mxu0 0.0
    %271 = vmatprep.subr.mxu0 0.0
    %272 = vmatpush1.xpose.msra.mxu0 0.0
    %273 = vmatprep.subr.mxu0 0.0
    %274 = vmatpush1.xpose.msra.mxu0 0.0
    %275 = vmatprep.subr.mxu0 0.0
    %276 = vmatpush1.xpose.msra.mxu0 0.0
    %277 = vmatprep.subr.mxu0 0.0
    %278 = vmatpush1.xpose.msra.mxu0 0.0
    %279 = vmatprep.subr.mxu0 0.0
    %280 = vmatpush1.xpose.msra.mxu0 0.0
    %281 = vmatprep.subr.mxu0 0.0
    %282 = vmatpush1.xpose.msra.mxu0 0.0
    %283 = vmatprep.subr.mxu0 0.0
    %284 = vmatpush1.xpose.msra.mxu0 0.0
    %285 = vmatprep.subr.mxu0 0.0
    %286 = vmatpush1.xpose.msra.mxu0 0.0
    %287 = vmatprep.subr.mxu0 0.0
    %288 = vmatpush1.xpose.msra.mxu0 0.0
    %289 = vmatprep.subr.mxu0 0.0
    %290 = vmatpush1.xpose.msra.mxu0 0.0
    %291 = vmatprep.mubr.f32.mxu0 0.0
    %292 = vmatmul.mubr.f32.gmra.mrb[0].mxu0 %v156
    %v293 = vpop.f32.mrb[0].mxu0
    %v294 = vadd.f32 0.0, %v293
    %v295 = vpop.f32.mrb[0].mxu0
    %296 = vmatprep.mubr.f32.mxu0 0.0
    %297 = vmatmul.mubr.f32.gmra.mrb[0].mxu0 %v159
    %v298 = vpop.f32.mrb[0].mxu0
    %v299 = vadd.f32 0.0, %v298
    %v300 = vpop.f32.mrb[0].mxu0
    %301 = vmatprep.mubr.f32.mxu0 0.0
    %302 = vmatmul.mubr.f32.gmra.mrb[0].mxu0 %v162
    %v303 = vpop.f32.mrb[0].mxu0
    %v304 = vadd.f32 0.0, %v303
    %v305 = vpop.f32.mrb[0].mxu0
    %306 = vmatprep.mubr.f32.mxu0 0.0
    %307 = vmatmul.mubr.f32.gmra.mrb[0].mxu0 %v165
    %v308 = vpop.f32.mrb[0].mxu0
    %v309 = vadd.f32 0.0, %v308
    %v310 = vpop.f32.mrb[0].mxu0
    %311 = vmatprep.mubr.f32.mxu0 0.0
    %312 = vmatmul.mubr.f32.gmra.mrb[0].mxu0 %v168
    %v313 = vpop.f32.mrb[0].mxu0
    %v314 = vadd.f32 0.0, %v313
    %v315 = vpop.f32.mrb[0].mxu0
    %316 = vmatprep.mubr.f32.mxu0 0.0
    %317 = vmatmul.mubr.f32.gmra.mrb[0].mxu0 %v171
    %v318 = vpop.f32.mrb[0].mxu0
    %v319 = vadd.f32 0.0, %v318
    %v320 = vpop.f32.mrb[0].mxu0
    %321 = vmatprep.mubr.f32.mxu0 0.0
    %322 = vmatmul.mubr.f32.gmra.mrb[0].mxu0 %v174
    %v323 = vpop.f32.mrb[0].mxu0
    %v324 = vadd.f32 0.0, %v323
    %v325 = vpop.f32.mrb[0].mxu0
    %326 = vmatprep.mubr.f32.mxu0 0.0
    %327 = vmatmul.mubr.f32.gmra.mrb[0].mxu0 %v177
    %v328 = vpop.f32.mrb[0].mxu0
    %v329 = vadd.f32 0.0, %v328
    %v330 = vpop.f32.mrb[0].mxu0
    %331 = vdwg.mxu0
    %v332 = vxor.u32 %v294, 2147483648
    %v333 = vxor.u32 %v299, 2147483648
    %v334 = vxor.u32 %v304, 2147483648
    %v335 = vxor.u32 %v309, 2147483648
    %v336 = vxor.u32 %v314, 2147483648
    %v337 = vxor.u32 %v319, 2147483648
    %v338 = vxor.u32 %v324, 2147483648
    %v339 = vxor.u32 %v329, 2147483648
    %v340 = vmul.f32 %v332, 1.442695
    %v341 = vpow.pop %v340
    %v342 = vmul.f32 %v333, 1.442695
    %v343 = vpow.pop %v342
    %v344 = vmul.f32 %v334, 1.442695
    %v345 = vpow.pop %v344
    %v346 = vmul.f32 %v335, 1.442695
    %v347 = vpow.pop %v346
    %v348 = vmul.f32 %v336, 1.442695
    %v349 = vpow.pop %v348
    %v350 = vmul.f32 %v337, 1.442695
    %v351 = vpow.pop %v350
    %v352 = vmul.f32 %v338, 1.442695
    %v353 = vpow.pop %v352
    %v354 = vmul.f32 %v339, 1.442695
    %v355 = vpow.pop %v354
    %v356 = vadd.f32 %v341, 1.0
    %v357 = vadd.f32 %v343, 1.0
    %v358 = vadd.f32 %v345, 1.0
    %v359 = vadd.f32 %v347, 1.0
    %v360 = vadd.f32 %v349, 1.0
    %v361 = vadd.f32 %v351, 1.0
    %v362 = vadd.f32 %v353, 1.0
    %v363 = vadd.f32 %v355, 1.0
    %v364 = vrcp.pop %v356
    %v365 = vmul.f32 1.0, %v364
    %v366 = vrcp.pop %v357
    %v367 = vmul.f32 1.0, %v366
    %v368 = vrcp.pop %v358
    %v369 = vmul.f32 1.0, %v368
    %v370 = vrcp.pop %v359
    %v371 = vmul.f32 1.0, %v370
    %v372 = vrcp.pop %v360
    %v373 = vmul.f32 1.0, %v372
    %v374 = vrcp.pop %v361
    %v375 = vmul.f32 1.0, %v374
    %v376 = vrcp.pop %v362
    %v377 = vmul.f32 1.0, %v376
    %v378 = vrcp.pop %v363
    %v379 = vmul.f32 1.0, %v378
    %v380 = vmul.f32 %v15, %v365
    %v381 = vmul.f32 %v16, %v367
    %v382 = vmul.f32 %v17, %v369
    %v383 = vmul.f32 %v18, %v371
    %v384 = vmul.f32 %v19, %v373
    %v385 = vmul.f32 %v20, %v375
    %v386 = vmul.f32 %v21, %v377
    %v387 = vmul.f32 %v22, %v379
    %388 = vst [vmem:[#allocation2] sm:$0xff] %v380
    %389 = vst [vmem:[#allocation2 + $0x8] sm:$0xff] %v381
    %390 = vst [vmem:[#allocation2 + $0x10] sm:$0xff] %v382
    %391 = vst [vmem:[#allocation2 + $0x18] sm:$0xff] %v383
    %392 = vst [vmem:[#allocation2 + $0x20] sm:$0xff] %v384
    %393 = vst [vmem:[#allocation2 + $0x28] sm:$0xff] %v385
    %394 = vst [vmem:[#allocation2 + $0x30] sm:$0xff] %v386
    %395 = vst [vmem:[#allocation2 + $0x38] sm:$0xff] %v387
    // Predicated region
    $region14: #{tpu_custom_call.1} parent=1 // pred_check
      _
    $region15: #{tpu_custom_call.1} parent=1 // pred_check_branch
      %397 = sbr.rel (0) target = $region17
    $region16: #{tpu_custom_call.1} parent=1 // pred_region
      %s399 = ssub.s32 1024, 1024
      %400 = vsyncadd [#allocation3], %s399
      %s401 = sshll.u32 [#allocation2], 4
      %s402 = int_to_ptr.vmem [resolvable:$true] %s401
      %407 = dma.vmem_to_hbm [thread:$0]  %s402, 1024, %s3, [#allocation3], 128, 128, 8
    $region17: #{tpu_custom_call.1} parent=1 // pred_fallthru
      _
    // Predicated region
    $region18: #{tpu_custom_call.1} parent=1 // pred_check
      _
    $region19: #{tpu_custom_call.1} parent=1 // pred_check_branch
      %409 = sbr.rel (0) target = $region21
    $region20: #{tpu_custom_call.1} parent=1 // pred_region
      %410 = dma.done [#allocation3], 1024
    $region21: #{tpu_custom_call.1} parent=1 // pred_fallthru
      _
    %411 = vsyncpa [#allocation3], 1

</llo_original>
